<compile_context>
chip_gen: v7x
topology: tpu7x:2x2x1
jax: 0.10.0
libtpu: 0.0.40
codegen_flags: <defaults>
</compile_context>

<pallas_src>
import math
import functools

import jax
import jax.numpy as jnp
from jax.experimental import pallas as pl
from jax.experimental.pallas import tpu as pltpu

EPS = 1e-6                      # norm_layer = partial(nn.LayerNorm, eps=1e-6)
MM_DTYPE = jnp.bfloat16         # dtype of MXU operands (accumulation is always f32)
_MLP_CHUNK = 1024               # mlp_dim tile (bounds the (S, chunk) f32 intermediate)


def _layernorm(x, g, b):
    """LayerNorm over the last axis (biased variance, eps=1e-6), in f32."""
    mu = jnp.mean(x, axis=-1, keepdims=True)
    xc = x - mu
    var = jnp.mean(xc * xc, axis=-1, keepdims=True)
    return xc * jax.lax.rsqrt(var + EPS) * g + b


# ----------------------------- patch embedding ------------------------------
def patch_embed_kernel(p_ref, w_ref, b_ref, o_ref):
    o_ref[...] = (
        jnp.dot(p_ref[...], w_ref[...], preferred_element_type=jnp.float32)
        + b_ref[...]
    )


def patch_embed(patches, w, b):
    # patches: (M, K) = (B*N, 3*p*p) bf16, w: (K, D) bf16, b: (1, D) f32
    M, K = patches.shape
    D = w.shape[1]
    # Pick the largest row tile that divides M (512 reaches ~85% of HBM roofline);
    # fall back to the full extent for small / unaligned M (full-extent blocks always
    # satisfy the (8,128) rule).
    if M % 512 == 0:
        tm = 512
    elif M % 256 == 0:
        tm = 256
    elif M % 128 == 0:
        tm = 128
    else:
        tm = M
    return pl.pallas_call(
        patch_embed_kernel,
        grid=(M // tm,),
        in_specs=[
            pl.BlockSpec((tm, K), lambda i: (i, 0)),
            pl.BlockSpec((K, D), lambda i: (0, 0)),
            pl.BlockSpec((1, D), lambda i: (0, 0)),
        ],
        out_specs=pl.BlockSpec((tm, D), lambda i: (i, 0)),
        out_shape=jax.ShapeDtypeStruct((M, D), jnp.float32),
        compiler_params=pltpu.CompilerParams(dimension_semantics=("parallel",)),
    )(patches, w, b)


# ----------------------------- encoder block --------------------------------
def encoder_block_kernel(
    x_ref,
    ln1g, ln1b, wqkv, bqkv, wo, bo, ln2g, ln2b, w1, b1, w2, b2,
    o_ref,
    *, num_heads,
):
    x = x_ref[0]                                   # (S, D) f32 residual stream
    S, D = x.shape
    hd = D // num_heads
    mm = wqkv.dtype                                # matmul operand dtype (bf16)

    # --- ln_1 + multi-head self-attention ---
    x1 = _layernorm(x, ln1g[...], ln1b[...])
    # One full-width (S, D) x (D, 3D) MXU matmul for Q, K, V.  The 1/sqrt(hd)
    # attention scale is folded into the Q columns of wqkv / bqkv in the wrapper.
    qkv = jnp.dot(x1.astype(mm), wqkv[...],
                  preferred_element_type=jnp.float32) + bqkv[...]       # (S, 3D) f32

    heads = []
    for h in range(num_heads):                     # static unroll, 2-D per-head matmuls
        q_h = qkv[:, h * hd:(h + 1) * hd].astype(mm)
        k_h = qkv[:, D + h * hd:D + (h + 1) * hd].astype(mm)
        v_h = qkv[:, 2 * D + h * hd:2 * D + (h + 1) * hd].astype(mm)
        s = jnp.einsum("qe,ke->qk", q_h, k_h,
                       preferred_element_type=jnp.float32)              # (S, S) f32
        m = jnp.max(s, axis=-1, keepdims=True)
        e = jnp.exp(s - m)                                              # f32 softmax stats
        p = e * pl.reciprocal(jnp.sum(e, axis=-1, keepdims=True), approx=True)
        heads.append(jnp.einsum("qk,ke->qe", p.astype(mm), v_h,
                                preferred_element_type=jnp.float32))    # (S, hd)
    # TODO(synk): for S=197-style lengths, pad S to 256 with a masked softmax so the
    # (S, S) score tiles are (8,128)-friendly instead of lane-padded.
    ctx = jnp.concatenate(heads, axis=-1)          # (S, D), head-major columns
    # Single K=D output projection (replaces per-head proj + H-way sum).
    attn = jnp.dot(ctx.astype(mm), wo[...],
                   preferred_element_type=jnp.float32) + bo[...]
    x2 = x + attn

    # --- ln_2 + MLP (Linear -> exact GELU -> Linear), tiled over mlp_dim ---
    y = _layernorm(x2, ln2g[...], ln2b[...]).astype(mm)
    mlp_dim = w1.shape[1]
    y2 = jnp.zeros((S, D), jnp.float32)
    for c0 in range(0, mlp_dim, _MLP_CHUNK):
        c1 = min(c0 + _MLP_CHUNK, mlp_dim)
        h1 = jnp.dot(y, w1[:, c0:c1], preferred_element_type=jnp.float32) + b1[:, c0:c1]
        h1 = jax.nn.gelu(h1, approximate=False)    # nn.GELU default = exact (erf), f32
        y2 = y2 + jnp.dot(h1.astype(mm), w2[c0:c1, :],
                          preferred_element_type=jnp.float32)
    o_ref[0] = x2 + y2 + b2[...]


# Whether pipeline_mode=pl.Buffered(1) (single-buffered constant weights) is accepted
# by this JAX/Mosaic build.  Probed lazily on the first encoder_block call.
_SINGLE_BUFFER_WEIGHTS = None


def _const_spec(shape, single_buffer):
    """Whole-array weight block, same block for every grid step."""
    zeros = (0,) * len(shape)
    idx = lambda b, _z=zeros: _z
    if single_buffer:
        # Constant-index blocks do not need double buffering; Buffered(1) halves
        # their VMEM residency (important for ViT-B on v7x's 64 MiB VMEM).
        return pl.BlockSpec(shape, idx, pipeline_mode=pl.Buffered(1))
    return pl.BlockSpec(shape, idx)


def _encoder_vmem_limit(S, D, H, mlp_dim, weights):
    """Generation-aware VMEM budget (bytes) for the encoder-block kernel."""
    wbytes = sum(int(w.size) * w.dtype.itemsize for w in weights)
    chunk = min(mlp_dim, _MLP_CHUNK)
    # f32 intermediates: residual/LN copies, qkv, per-head scores (worst case all heads
    # live because the head loop is unrolled), ctx, MLP chunk, plus (1,S,D) I/O blocks.
    interm = 4 * (12 * S * D + 2 * S * 3 * D + 4 * H * S * S + 3 * S * chunk)
    est = 2 * wbytes + interm + (8 << 20)      # 2x: worst case double-buffered weights
    try:
        cap = int(pltpu.get_tpu_info().vmem_capacity_bytes)
    except Exception:  # pragma: no cover - conservative fallback
        cap = 128 << 20
    cap_use = (cap * 3) // 4                   # leave headroom for compiler scratch
    return int(max(32 << 20, min(cap_use, est)))


def encoder_block(x, lp, num_heads):
    global _SINGLE_BUFFER_WEIGHTS
    B, S, D = x.shape
    weights = (
        lp["ln1_g"], lp["ln1_b"], lp["wqkv"], lp["bqkv"], lp["wo"], lp["bo"],
        lp["ln2_g"], lp["ln2_b"], lp["w1"], lp["b1"], lp["w2"], lp["b2"],
    )
    kern = functools.partial(encoder_block_kernel, num_heads=num_heads)
    vmem_limit = _encoder_vmem_limit(S, D, num_heads, lp["w1"].shape[1], weights)

    def build(single_buffer):
        in_specs = [pl.BlockSpec((1, S, D), lambda b: (b, 0, 0))]
        in_specs += [_const_spec(w.shape, single_buffer) for w in weights]
        return pl.pallas_call(
            kern,
            # Grid over batch; on v7x keep B even so both TensorCores get work.
            grid=(B,),
            in_specs=in_specs,
            out_specs=pl.BlockSpec((1, S, D), lambda b: (b, 0, 0)),
            out_shape=jax.ShapeDtypeStruct((B, S, D), jnp.float32),
            compiler_params=pltpu.CompilerParams(
                dimension_semantics=("parallel",),
                vmem_limit_bytes=vmem_limit,
            ),
        )

    if _SINGLE_BUFFER_WEIGHTS is None:
        try:
            out = build(True)(x, *weights)
            _SINGLE_BUFFER_WEIGHTS = True
            return out
        except Exception:
            _SINGLE_BUFFER_WEIGHTS = False
    if _SINGLE_BUFFER_WEIGHTS:
        return build(True)(x, *weights)
    return build(False)(x, *weights)


# --------------------------- final LN + class head ---------------------------
def head_kernel(x_ref, lng, lnb, wh, bh, o_ref):
    # x_ref holds only the class token (B, D); encoder.ln then slicing token 0
    # is identical to LayerNorm applied to token 0 alone.
    y = _layernorm(x_ref[...], lng[...], lnb[...])
    o_ref[...] = (
        jnp.dot(y.astype(wh.dtype), wh[...], preferred_element_type=jnp.float32)
        + bh[...]
    )


def head(cls_tok, lng, lnb, wh, bh):
    B = cls_tok.shape[0]
    C = wh.shape[1]
    return pl.pallas_call(
        head_kernel,
        out_shape=jax.ShapeDtypeStruct((B, C), jnp.float32),
    )(cls_tok, lng, lnb, wh, bh)


# ------------------------------- full forward --------------------------------
def extract_patches(x, patch_size):
    # x: (B, 3, H, W) NCHW -> (B*N, 3*p*p)   (flat order: c*p*p + di*p + dj,
    # matching conv weight (D, 3, p, p) flattened the same way)
    B, C, H, W = x.shape
    p = patch_size
    n = H // p
    x = x.reshape(B, C, n, p, n, p).transpose(0, 2, 4, 1, 3, 5)
    return x.reshape(B * n * n, C * p * p), n


def prepare_kernel_params(params, mm_dtype=MM_DTYPE):
    """Build kernel-layout params: fused (D,3D) QKV, (D,D) output proj, bf16 weights,
    1/sqrt(hd) folded into the Q columns.  Biases / LN params stay f32."""
    kp = {
        "conv_w": params["conv_w"].astype(mm_dtype),
        "conv_b": params["conv_b"],
        "class_token": params["class_token"],
        "pos_emb": params["pos_emb"],
        "ln_g": params["ln_g"], "ln_b": params["ln_b"],
        "head_w": params["head_w"].astype(mm_dtype),
        "head_b": params["head_b"],
        "layers": [],
    }
    for lp in params["layers"]:
        H, D, hd = lp["wq"].shape
        scale = 1.0 / math.sqrt(hd)

        def flat_w(w):                       # (H, D, hd) -> (D, H*hd), head-major cols
            return jnp.transpose(w, (1, 0, 2)).reshape(D, H * hd)

        wqkv = jnp.concatenate(
            [flat_w(lp["wq"] * scale), flat_w(lp["wk"]), flat_w(lp["wv"])],
            axis=1).astype(mm_dtype)                                    # (D, 3D)
        bqkv = jnp.concatenate(
            [(lp["bq"] * scale).reshape(1, H * hd),
             lp["bk"].reshape(1, H * hd),
             lp["bv"].reshape(1, H * hd)], axis=1)                      # (1, 3D) f32
        kp["layers"].append({
            "ln1_g": lp["ln1_g"], "ln1_b": lp["ln1_b"],
            "wqkv": wqkv, "bqkv": bqkv,
            "wo": lp["wo"].reshape(H * hd, D).astype(mm_dtype),         # (D, D)
            "bo": lp["bo"],
            "ln2_g": lp["ln2_g"], "ln2_b": lp["ln2_b"],
            "w1": lp["w1"].astype(mm_dtype), "b1": lp["b1"],
            "w2": lp["w2"].astype(mm_dtype), "b2": lp["b2"],
        })
    return kp


def vit_forward(x, kp, cfg):
    B = x.shape[0]
    D = cfg["hidden_dim"]
    patches, n = extract_patches(x, cfg["patch_size"])
    tok = patch_embed(patches.astype(kp["conv_w"].dtype), kp["conv_w"], kp["conv_b"])
    tok = tok.reshape(B, n * n, D)
    cls = jnp.broadcast_to(kp["class_token"], (B, 1, D))
    # TODO(synk): fold the pos_emb add (and cls concat) into the first encoder block to
    # avoid one extra full (B, S, D) HBM read+write between patch_embed and layer 0.
    seq = jnp.concatenate([cls, tok], axis=1) + kp["pos_emb"]
    for lp in kp["layers"]:
        seq = encoder_block(seq, lp, cfg["num_heads"])
    # Only the class token is needed by the head: slice in the wrapper so the head
    # kernel DMAs (B, D) instead of the full (B, S, D) sequence.
    cls_tok = seq[:, 0, :]
    return head(cls_tok, kp["ln_g"], kp["ln_b"], kp["head_w"], kp["head_b"])


# ------------------------- pure-JAX reference (check) -------------------------
def vit_reference(x, params, cfg):
    B = x.shape[0]
    D = cfg["hidden_dim"]
    H = cfg["num_heads"]
    hd = D // H
    patches, n = extract_patches(x, cfg["patch_size"])
    with jax.default_matmul_precision("highest"):
        tok = (patches @ params["conv_w"] + params["conv_b"]).reshape(B, n * n, D)
        cls = jnp.broadcast_to(params["class_token"], (B, 1, D))
        seq = jnp.concatenate([cls, tok], axis=1) + params["pos_emb"]
        for lp in params["layers"]:
            y = _layernorm(seq, lp["ln1_g"], lp["ln1_b"])
            q = jnp.einsum("bsd,hde->bhse", y, lp["wq"]) + lp["bq"]
            k = jnp.einsum("bsd,hde->bhse", y, lp["wk"]) + lp["bk"]
            v = jnp.einsum("bsd,hde->bhse", y, lp["wv"]) + lp["bv"]
            s = jnp.einsum("bhqe,bhke->bhqk", q, k) / math.sqrt(hd)
            p = jax.nn.softmax(s, axis=-1)
            ctx = jnp.einsum("bhqk,bhke->bhqe", p, v)
            o = jnp.einsum("bhqe,hed->bqd", ctx, lp["wo"]) + lp["bo"]
            x2 = seq + o
            y2 = _layernorm(x2, lp["ln2_g"], lp["ln2_b"])
            h1 = jax.nn.gelu(y2 @ lp["w1"] + lp["b1"], approximate=False)
            seq = x2 + h1 @ lp["w2"] + lp["b2"]
        x0 = _layernorm(seq[:, 0], params["ln_g"], params["ln_b"])
        return x0 @ params["head_w"] + params["head_b"]


# --------------------------------- params ------------------------------------
def make_params(key, cfg):
    D, M, C = cfg["hidden_dim"], cfg["mlp_dim"], cfg["num_classes"]
    H = cfg["num_heads"]
    hd = D // H
    p = cfg["patch_size"]
    S = (cfg["image_size"] // p) ** 2 + 1
    pd = 3 * p * p

    keys = iter(jax.random.split(key, 64))
    nrm = lambda k, shp, std: std * jax.random.normal(k, shp, dtype=jnp.float32)

    params = {
        "conv_w": nrm(next(keys), (pd, D), math.sqrt(1.0 / pd)),
        "conv_b": jnp.zeros((1, D), jnp.float32),
        "class_token": jnp.zeros((1, 1, D), jnp.float32),
        "pos_emb": nrm(next(keys), (1, S, D), 0.02),
        "ln_g": jnp.ones((1, D), jnp.float32),
        "ln_b": jnp.zeros((1, D), jnp.float32),
        # NOTE: PyTorch inits the head to zeros; we use small random values so the
        # output is non-trivial while staying deterministic.
        "head_w": nrm(next(keys), (D, C), 0.02),
        "head_b": jnp.zeros((1, C), jnp.float32),
        "layers": [],
    }
    for _ in range(cfg["num_layers"]):
        params["layers"].append({
            "ln1_g": jnp.ones((1, D), jnp.float32),
            "ln1_b": jnp.zeros((1, D), jnp.float32),
            # Per-head projection weights (head axis leading); the kernel wrapper fuses
            # them into a single (D, 3D) matrix with the attention scale folded in.
            "wq": nrm(next(keys), (H, D, hd), math.sqrt(1.0 / D)),
            "bq": jnp.zeros((H, 1, hd), jnp.float32),
            "wk": nrm(next(keys), (H, D, hd), math.sqrt(1.0 / D)),
            "bk": jnp.zeros((H, 1, hd), jnp.float32),
            "wv": nrm(next(keys), (H, D, hd), math.sqrt(1.0 / D)),
            "bv": jnp.zeros((H, 1, hd), jnp.float32),
            "wo": nrm(next(keys), (H, hd, D), math.sqrt(1.0 / D)),
            "bo": jnp.zeros((1, D), jnp.float32),
            "ln2_g": jnp.ones((1, D), jnp.float32),
            "ln2_b": jnp.zeros((1, D), jnp.float32),
            "w1": nrm(next(keys), (D, M), math.sqrt(2.0 / (D + M))),   # pre-transposed
            "b1": jnp.zeros((1, M), jnp.float32),
            "w2": nrm(next(keys), (M, D), math.sqrt(2.0 / (D + M))),   # pre-transposed
            "b2": jnp.zeros((1, D), jnp.float32),
        })
    return params


if __name__ == "__main__":
    cfg = dict(
        image_size=16,
        patch_size=4,
        num_layers=2,
        num_heads=2,
        hidden_dim=32,
        mlp_dim=64,
        num_classes=10,
    )
    key = jax.random.PRNGKey(0)
    pkey, xkey = jax.random.split(key)
    params = make_params(pkey, cfg)
    kparams = prepare_kernel_params(params, MM_DTYPE)

    x = jax.random.normal(xkey, (2, 3, cfg["image_size"], cfg["image_size"]),
                          dtype=jnp.float32)

    out = vit_forward(x, kparams, cfg)
    out = jax.block_until_ready(out)

    ref = jax.block_until_ready(vit_reference(x, params, cfg))
    assert out.shape == (2, cfg["num_classes"])
    max_err = float(jnp.max(jnp.abs(out - ref)))
    # bf16 MXU operands (f32 accumulation) + approx reciprocal in the softmax dominate
    # the difference vs. the f32 reference; 2e-2 absolute is a comfortable bound here.
    assert max_err < 2e-2, f"kernel output mismatch vs reference (max abs err {max_err})"

    print("KERNEL_OK")
</pallas_src>

<mosaic_0001>
module attributes {stable_mosaic.version = 11 : i64} {
  func.func @patch_embed_kernel(%arg0: i32, %arg1: memref<32x48xbf16, #tpu.memory_space<vmem>>, %arg2: memref<48x32xbf16, #tpu.memory_space<vmem>>, %arg3: memref<1x32xf32, #tpu.memory_space<vmem>>, %arg4: memref<32x32xf32, #tpu.memory_space<vmem>>) attributes {dimension_semantics = [#tpu.dimension_semantics<parallel>], iteration_bounds = array<i64: 1>, scalar_prefetch = 0 : i64, scratch_operands = 0 : i64, tpu.core_type = #tpu.core_type<tc>, window_params = [{transform_indices = @transform_0, window_bounds = array<i64: 32, 48>}, {pipeline_mode = #tpu.pipeline_mode<synchronous>, transform_indices = @transform_1, window_bounds = array<i64: 48, 32>}, {pipeline_mode = #tpu.pipeline_mode<synchronous>, transform_indices = @transform_2, window_bounds = array<i64: 1, 32>}, {transform_indices = @transform_3, window_bounds = array<i64: 32, 32>}]} {
    %c0 = arith.constant 0 : index
    %c0_0 = arith.constant 0 : index
    %0 = vector.load %arg1[%c0, %c0_0] : memref<32x48xbf16, #tpu.memory_space<vmem>>, vector<32x48xbf16>
    %c0_1 = arith.constant 0 : index
    %c0_2 = arith.constant 0 : index
    %1 = vector.load %arg2[%c0_1, %c0_2] : memref<48x32xbf16, #tpu.memory_space<vmem>>, vector<48x32xbf16>
    %cst = arith.constant dense<0.000000e+00> : vector<32x32xf32>
    %2 = tpu.matmul %0, %1, %cst {dimension_numbers = #tpu.dot_dimension_numbers<[1], [0], [0], [1], [0, 0, 1, 1], [], []>} : vector<32x48xbf16>, vector<48x32xbf16>, vector<32x32xf32> -> vector<32x32xf32>
    %c0_3 = arith.constant 0 : index
    %c0_4 = arith.constant 0 : index
    %3 = vector.load %arg3[%c0_3, %c0_4] : memref<1x32xf32, #tpu.memory_space<vmem>>, vector<1x32xf32>
    %4 = vector.broadcast %3 : vector<1x32xf32> to vector<32x32xf32>
    %5 = arith.addf %2, %4 : vector<32x32xf32>
    %c0_5 = arith.constant 0 : index
    %c0_6 = arith.constant 0 : index
    %6 = vector.load %arg4[%c0_5, %c0_6] : memref<32x32xf32, #tpu.memory_space<vmem>>, vector<32x32xf32>
    tpu.vector_store %arg4[%c0_5, %c0_6], %5 {strides = array<i32>} : memref<32x32xf32, #tpu.memory_space<vmem>>, vector<32x32xf32>,
    return
  }
  func.func @transform_0(%arg0: i32) -> (i32, i32) {
    %c0_i32 = arith.constant 0 : i32
    %c0_i32_0 = arith.constant 0 : i32
    return %arg0, %c0_i32 : i32, i32
  }
  func.func @transform_1(%arg0: i32) -> (i32, i32) {
    %c0_i32 = arith.constant 0 : i32
    %c0_i32_0 = arith.constant 0 : i32
    %c0_i32_1 = arith.constant 0 : i32
    return %c0_i32, %c0_i32_0 : i32, i32
  }
  func.func @transform_2(%arg0: i32) -> (i32, i32) {
    %c0_i32 = arith.constant 0 : i32
    %c0_i32_0 = arith.constant 0 : i32
    %c0_i32_1 = arith.constant 0 : i32
    return %c0_i32, %c0_i32_0 : i32, i32
  }
  func.func @transform_3(%arg0: i32) -> (i32, i32) {
    %c0_i32 = arith.constant 0 : i32
    %c0_i32_0 = arith.constant 0 : i32
    return %arg0, %c0_i32 : i32, i32
  }
}

</mosaic_0001>

<llo_original>
// kernel: tpu_custom_call.1
$region0: #{tpu_custom_call.1}
  #allocation0 [shape = 'u32[]', space=smem, size = 0x4, offset = 0x4, fixed_abs, tag = 'smem constant byte address 0x4 - core index']
  #allocation1 [shape = 'u32[144,128]{1,0:T(1,128)}', space=vmem, size = 0x12000, scoped, tag = 'internal scratch']
  %s0 = inlined_call_operand.vmem [shape: bf16[32,48], index: 0, kind: input, shape index: {}]
  %s1 = inlined_call_operand.vmem [shape: bf16[48,32], index: 1, kind: input, shape index: {}]
  %s2 = inlined_call_operand.vmem [shape: f32[1,32], index: 2, kind: input, shape index: {}]
  %s3 = inlined_call_operand.hbm [shape: f32[32,32], index: 3, kind: output, shape index: {}]
  %s4 = sld [smem:[#allocation0]]
  $region22: #{tpu_custom_call.1} parent=0
    _
  %s6 = ssub.s32 1, %s4
  %s7 = scalar_select 0, %s6, %s4
  $region1: #{tpu_custom_call.1} parent=0
    #allocation2 [shape = 'u8[16384]{0}', space=vmem, size = 0x4000, scoped, tag = 'output window, operand 0, single buffered']
    #allocation3 [shape = 's32[1]{0}', space=sflag, size = 0x4, scoped, tag = 'scoped memory for tpu_custom_call.1']
    %8 = vsyncpa [#allocation3], 0
    // Predicated region
    $region2: #{tpu_custom_call.1} parent=1 // pred_check
      _
    $region3: #{tpu_custom_call.1} parent=1 // pred_check_branch
      %10 = sbr.rel (0) target = $region5
    $region4: #{tpu_custom_call.1} parent=1 // pred_region
      _
    $region5: #{tpu_custom_call.1} parent=1 // pred_fallthru
      _
    // Predicated region
    $region6: #{tpu_custom_call.1} parent=1 // pred_check
      _
    $region7: #{tpu_custom_call.1} parent=1 // pred_check_branch
      %12 = sbr.rel (0) target = $region9
    $region8: #{tpu_custom_call.1} parent=1 // pred_region
      _
    $region9: #{tpu_custom_call.1} parent=1 // pred_fallthru
      _
    // Predicated region
    $region10: #{tpu_custom_call.1} parent=1 // pred_check
      _
    $region11: #{tpu_custom_call.1} parent=1 // pred_check_branch
      %14 = sbr.rel (0) target = $region13
    $region12: #{tpu_custom_call.1} parent=1 // pred_region
      _
    $region13: #{tpu_custom_call.1} parent=1 // pred_fallthru
      _
    %v16 = vld [vmem:[%s0] sm:$0xf]
    %v17 = vld [vmem:[%s0 + $0x4] sm:$0xf]
    %v18 = vld [vmem:[%s0 + $0x8] sm:$0xf]
    %v19 = vld [vmem:[%s0 + $0xc] sm:$0xf]
    %v20 = vld [vmem:[%s1] sm:$0xf]
    %v21 = vld [vmem:[%s1 + $0x4] sm:$0xf]
    %v22 = vld [vmem:[%s1 + $0x8] sm:$0xf]
    %v23 = vld [vmem:[%s1 + $0xc] sm:$0xf]
    %v24 = vld [vmem:[%s1 + $0x10] sm:$0xf]
    %v25 = vld [vmem:[%s1 + $0x14] sm:$0xf]
    %v26 = vld [vmem:[%s2] sm:$0x1]
    %v28 = vlaneseq
    %v29 = vshrl.u32 %v28, 7
    %v30 = vsub.s32 0, %v29
    %v31 = vrot.slane %v26, %v30
    %v37 = vunpack.c.l.b16 %v16
    %v38 = vunpack.c.l.b16 %v17
    %v39 = vunpack.c.l.b16 %v18
    %v40 = vunpack.c.l.b16 %v19
    %v41 = vpack.c.b16 %v38, %v37
    %v42 = vpack.c.b16 %v40, %v39
    %v49 = vunpack.c.l.b16 %v20
    %v50 = vunpack.c.l.b16 %v21
    %v51 = vunpack.c.l.b16 %v22
    %v52 = vunpack.c.l.b16 %v23
    %v53 = vunpack.c.l.b16 %v24
    %v54 = vunpack.c.l.b16 %v25
    %v55 = vpack.c.b16 %v50, %v49
    %v56 = vpack.c.b16 %v52, %v51
    %v57 = vpack.c.b16 %v54, %v53
    %vm61 = vcmask 392192
    %v63 = vsel %vm61, %v41, 0
    %v66 = vsel %vm61, %v42, 0
    %68 = vmatprep.subr.bf16.mxu0 0
    %69 = vmatpush1.bf16.msra.mxu0 %v55
    %70 = vmatprep.subr.bf16.mxu0 0
    %71 = vmatpush1.bf16.msra.mxu0 %v56
    %72 = vmatprep.subr.bf16.mxu0 0
    %73 = vmatpush1.bf16.msra.mxu0 %v57
    %74 = vmatprep.subr.bf16.mxu0 0
    %75 = vmatpush1.bf16.msra.mxu0 0
    %76 = vmatprep.subr.bf16.mxu0 0
    %77 = vmatpush1.bf16.msra.mxu0 0
    %78 = vmatprep.subr.bf16.mxu0 0
    %79 = vmatpush1.bf16.msra.mxu0 0
    %80 = vmatprep.subr.bf16.mxu0 0
    %81 = vmatpush1.bf16.msra.mxu0 0
    %82 = vmatprep.subr.bf16.mxu0 0
    %83 = vmatpush1.bf16.msra.mxu0 0
    %84 = vmatprep.subr.bf16.mxu0 0
    %85 = vmatpush1.bf16.msra.mxu0 0
    %86 = vmatprep.subr.bf16.mxu0 0
    %87 = vmatpush1.bf16.msra.mxu0 0
    %88 = vmatprep.subr.bf16.mxu0 0
    %89 = vmatpush1.bf16.msra.mxu0 0
    %90 = vmatprep.subr.bf16.mxu0 0
    %91 = vmatpush1.bf16.msra.mxu0 0
    %92 = vmatprep.subr.bf16.mxu0 0
    %93 = vmatpush1.bf16.msra.mxu0 0
    %94 = vmatprep.subr.bf16.mxu0 0
    %95 = vmatpush1.bf16.msra.mxu0 0
    %96 = vmatprep.subr.bf16.mxu0 0
    %97 = vmatpush1.bf16.msra.mxu0 0
    %98 = vmatprep.subr.bf16.mxu0 0
    %99 = vmatpush1.bf16.msra.mxu0 0
    %100 = vmatprep.mubr.bf16.mxu0 0
    %101 = vmatmul.mubr.bf16.gmra.mrb[0].mxu0 %v63
    %v102 = vpop.f32.mrb[0].mxu0
    %v103 = vadd.f32 %v31, %v102
    %v104 = vpop.f32.mrb[0].mxu0
    %v105 = vpop.f32.mrb[0].mxu0
    %v106 = vadd.f32 %v31, %v105
    %v107 = vpop.f32.mrb[0].mxu0
    %108 = vmatprep.mubr.bf16.mxu0 0
    %109 = vmatmul.mubr.bf16.gmra.mrb[0].mxu0 %v66
    %v110 = vpop.f32.mrb[0].mxu0
    %v111 = vadd.f32 %v31, %v110
    %v112 = vpop.f32.mrb[0].mxu0
    %v113 = vpop.f32.mrb[0].mxu0
    %v114 = vadd.f32 %v31, %v113
    %v115 = vpop.f32.mrb[0].mxu0
    %116 = vdwg.mxu0
    %vm117 = vcmask 261120
    %118 = vst.msk [vmem:[#allocation2] sm:$0xff] %vm117, %v103
    %119 = vst.msk [vmem:[#allocation2 + $0x8] sm:$0xff] %vm117, %v106
    %120 = vst.msk [vmem:[#allocation2 + $0x10] sm:$0xff] %vm117, %v111
    %121 = vst.msk [vmem:[#allocation2 + $0x18] sm:$0xff] %vm117, %v114
    // Predicated region
    $region14: #{tpu_custom_call.1} parent=1 // pred_check
      _
    $region15: #{tpu_custom_call.1} parent=1 // pred_check_branch
      %123 = sbr.rel (0) target = $region17
    $region16: #{tpu_custom_call.1} parent=1 // pred_region
      %s125 = ssub.s32 512, 512
      %126 = vsyncadd [#allocation3], %s125
      %s127 = sshll.u32 [#allocation2], 4
      %s128 = int_to_ptr.vmem [resolvable:$true] %s127
      %133 = dma.vmem_to_hbm [thread:$0]  %s128, 512, %s3, [#allocation3], 128, 128, 8
    $region17: #{tpu_custom_call.1} parent=1 // pred_fallthru
      _
    // Predicated region
    $region18: #{tpu_custom_call.1} parent=1 // pred_check
      _
    $region19: #{tpu_custom_call.1} parent=1 // pred_check_branch
      %135 = sbr.rel (0) target = $region21
    $region20: #{tpu_custom_call.1} parent=1 // pred_region
      %136 = dma.done [#allocation3], 512
    $region21: #{tpu_custom_call.1} parent=1 // pred_fallthru
      _
    %137 = vsyncpa [#allocation3], 1

</llo_original>
